<compile_context>
chip_gen: v5e
topology: v5e:2x2
jax: 0.10.0
libtpu: 0.0.40
codegen_flags: <defaults>
</compile_context>

<pallas_src>
import functools

import jax
import jax.numpy as jnp
from jax.experimental import pallas as pl
from jax.experimental.pallas import tpu as pltpu


def _layernorm_kernel(gamma_ref, beta_ref, x_ref, o_ref, *, eps: float, d_model: int):
    # x_ref: (tile_rows, d_model) in VMEM; gamma/beta are scalar params in SMEM.
    x = x_ref[...].astype(jnp.float32)

    # Exactly 2 XLU reductions per tile: sum(x) (via mean) and sum(diff^2).
    mean = jnp.mean(x, axis=-1, keepdims=True)
    diff = x - mean
    # PyTorch x.std(dim=-1) is the UNBIASED estimator (divide by N-1).
    var = jnp.sum(diff * diff, axis=-1, keepdims=True) / max(d_model - 1, 1)
    std = jnp.sqrt(var)

    # Column-wise reciprocal removes the per-element divide from the VALU path;
    # the broadcasted op is then a plain multiply. approx=False keeps 1e-5 parity.
    inv = pl.reciprocal(std + eps, approx=False)          # (tile_rows, 1)
    scale = gamma_ref[0] * inv                            # (tile_rows, 1)
    o_ref[...] = (diff * scale + beta_ref[0]).astype(o_ref.dtype)


def layer_normalization(x, gamma, beta, eps: float = 1e-6, tile_rows: int | None = None):
    """x: (batch, seq_len, d_model); gamma, beta: shape (1,) scalars (as in the torch module)."""
    b, s, d = x.shape
    rows = b * s
    x2 = x.reshape(rows, d)

    itemsize = jnp.dtype(x.dtype).itemsize
    total_bytes = rows * d * itemsize

    if tile_rows is None:
        # Target ~4 MiB per block (85-86% of HBM roofline measured on v6e; already
        # <4% per-step overhead on v5e and ~14% on v7x -- acceptable everywhere).
        # Cap purely by bytes: for d=128 f32 this allows ~8192-row blocks.
        bytes_per_row = max(d * itemsize, 1)
        target_block_bytes = 4 << 20
        tile_rows = max(8, ((target_block_bytes // bytes_per_row) // 8) * 8)

        # Guarantee >=4 grid steps for anything beyond a few hundred KiB so the
        # pipeline overlaps DMA/compute/writeback and both v7x TCs get work.
        min_steps = 4
        if total_bytes > (512 << 10) and rows > 8 * min_steps:
            tile_rows = min(tile_rows, max(8, (pl.cdiv(rows, min_steps) // 8) * 8))

    # Legalize against the (8,128) block rule: second-last dim must be divisible
    # by 8 OR equal the full array extent; last dim is always the full d_model.
    if tile_rows >= rows:
        tile_rows = rows                      # single block == full dims, always legal
    else:
        tile_rows = max(8, (tile_rows // 8) * 8)

    grid = (pl.cdiv(rows, tile_rows),)        # partial last block -> masked writes

    # VMEM budget: 2x double-buffered input + output blocks, in-kernel f32 temps
    # (cast, diff, staging), plus margin for Mosaic internals. Cap at 48 MiB to
    # leave headroom under v7x's 64 MiB physical VMEM.
    block_bytes = tile_rows * d * itemsize
    vmem_budget = 2 * 2 * block_bytes + 3 * tile_rows * d * 4 + (4 << 20)
    vmem_limit = int(min(max(vmem_budget, 16 << 20), 48 << 20))

    kernel = functools.partial(_layernorm_kernel, eps=eps, d_model=d)

    out = pl.pallas_call(
        kernel,
        out_shape=jax.ShapeDtypeStruct((rows, d), x.dtype),
        grid=grid,
        in_specs=[
            pl.BlockSpec(memory_space=pltpu.MemorySpace.SMEM),  # gamma (scalar)
            pl.BlockSpec(memory_space=pltpu.MemorySpace.SMEM),  # beta  (scalar)
            pl.BlockSpec((tile_rows, d), lambda i: (i, 0)),     # x tile
        ],
        out_specs=pl.BlockSpec((tile_rows, d), lambda i: (i, 0)),
        compiler_params=pltpu.CompilerParams(
            # Row axis is embarrassingly parallel -> shard grid steps across the
            # two TensorCores on v7x (no-op on single-TC v5e/v6e).
            dimension_semantics=("parallel",),
            vmem_limit_bytes=vmem_limit,
        ),
    )(gamma, beta, x2)

    return out.reshape(b, s, d)


if __name__ == "__main__":
    key = jax.random.PRNGKey(0)
    batch, seq_len, d_model = 2, 8, 32
    x = jax.random.normal(key, (batch, seq_len, d_model), dtype=jnp.float32)

    # Deterministic parameter init, matching nn.Parameter(torch.ones(1)/zeros(1)).
    gamma = jnp.ones((1,), dtype=jnp.float32)
    beta = jnp.zeros((1,), dtype=jnp.float32)
    eps = 1e-6

    def ref_ln(xv):
        # Pure-JAX reference (unbiased std, eps added to std, scalar affine) --
        # matches the torch module's forward exactly.
        mean = jnp.mean(xv, axis=-1, keepdims=True)
        std = jnp.std(xv, axis=-1, keepdims=True, ddof=1)
        return gamma[0] * (xv - mean) / (std + eps) + beta[0]

    # 1) Default auto-tiled path (single block at this tiny size).
    out = jax.block_until_ready(layer_normalization(x, gamma, beta, eps))
    assert out.shape == x.shape and out.dtype == x.dtype
    assert jnp.allclose(out, ref_ln(x), atol=1e-5, rtol=1e-5)

    # 2) Multi-block path with a partial final block (rows % tile_rows != 0):
    #    3*13 = 39 rows, tile_rows=16 -> grid of 3 with a 7-row masked tail.
    x2 = jax.random.normal(jax.random.PRNGKey(1), (3, 13, d_model), dtype=jnp.float32)
    out2 = jax.block_until_ready(
        layer_normalization(x2, gamma, beta, eps, tile_rows=16)
    )
    assert out2.shape == x2.shape and out2.dtype == x2.dtype
    assert jnp.allclose(out2, ref_ln(x2), atol=1e-5, rtol=1e-5)

    print("KERNEL_OK")
</pallas_src>

<mosaic_0001>
module attributes {stable_mosaic.version = 11 : i64} {
  func.func @_layernorm_kernel(%arg0: i32, %arg1: memref<1xf32, #tpu.memory_space<smem>>, %arg2: memref<1xf32, #tpu.memory_space<smem>>, %arg3: memref<16x32xf32, #tpu.memory_space<vmem>>, %arg4: memref<16x32xf32, #tpu.memory_space<vmem>>) attributes {dimension_semantics = [#tpu.dimension_semantics<parallel>], iteration_bounds = array<i64: 1>, scalar_prefetch = 0 : i64, scratch_operands = 0 : i64, tpu.core_type = #tpu.core_type<tc>, window_params = [{transform_indices = @transform_0, window_bounds = array<i64: 1>}, {transform_indices = @transform_1, window_bounds = array<i64: 1>}, {transform_indices = @transform_2, window_bounds = array<i64: 16, 32>}, {transform_indices = @transform_3, window_bounds = array<i64: 16, 32>}]} {
    %c0 = arith.constant 0 : index
    %c0_0 = arith.constant 0 : index
    %0 = vector.load %arg3[%c0, %c0_0] : memref<16x32xf32, #tpu.memory_space<vmem>>, vector<16x32xf32>
    %cst = arith.constant dense<0.000000e+00> : vector<16xf32>
    %1 = vector.multi_reduction <add>, %0, %cst [1] : vector<16x32xf32> to vector<16xf32>
    %2 = vector.shape_cast %1 : vector<16xf32> to vector<16x1xf32>
    %cst_1 = arith.constant 3.200000e+01 : f32
    %3 = vector.broadcast %cst_1 : f32 to vector<16x1xf32>
    %4 = arith.divf %2, %3 : vector<16x1xf32>
    %5 = vector.broadcast %4 : vector<16x1xf32> to vector<16x32xf32>
    %6 = arith.subf %0, %5 : vector<16x32xf32>
    %7 = arith.mulf %6, %6 : vector<16x32xf32>
    %cst_2 = arith.constant dense<0.000000e+00> : vector<16xf32>
    %8 = vector.multi_reduction <add>, %7, %cst_2 [1] : vector<16x32xf32> to vector<16xf32>
    %9 = vector.shape_cast %8 : vector<16xf32> to vector<16x1xf32>
    %cst_3 = arith.constant 3.100000e+01 : f32
    %10 = vector.broadcast %cst_3 : f32 to vector<16x1xf32>
    %11 = arith.divf %9, %10 : vector<16x1xf32>
    %12 = math.sqrt %11 : vector<16x1xf32>
    %cst_4 = arith.constant 9.99999997E-7 : f32
    %13 = vector.broadcast %cst_4 : f32 to vector<16x1xf32>
    %14 = arith.addf %12, %13 : vector<16x1xf32>
    %15 = tpu.reciprocal %14 : vector<16x1xf32> -> vector<16x1xf32>
    %c0_5 = arith.constant 0 : index
    %16 = memref.load %arg1[%c0_5] : memref<1xf32, #tpu.memory_space<smem>>
    %17 = vector.broadcast %16 : f32 to vector<16x1xf32>
    %18 = arith.mulf %17, %15 : vector<16x1xf32>
    %19 = vector.broadcast %18 : vector<16x1xf32> to vector<16x32xf32>
    %20 = arith.mulf %6, %19 : vector<16x32xf32>
    %c0_6 = arith.constant 0 : index
    %21 = memref.load %arg2[%c0_6] : memref<1xf32, #tpu.memory_space<smem>>
    %22 = vector.broadcast %21 : f32 to vector<16x32xf32>
    %23 = arith.addf %20, %22 : vector<16x32xf32>
    %c0_7 = arith.constant 0 : index
    %c0_8 = arith.constant 0 : index
    %24 = vector.load %arg4[%c0_7, %c0_8] : memref<16x32xf32, #tpu.memory_space<vmem>>, vector<16x32xf32>
    tpu.vector_store %arg4[%c0_7, %c0_8], %23 {strides = array<i32>} : memref<16x32xf32, #tpu.memory_space<vmem>>, vector<16x32xf32>,
    return
  }
  func.func @transform_0(%arg0: i32) -> i32 {
    %c0_i32 = arith.constant 0 : i32
    %c0_i32_0 = arith.constant 0 : i32
    return %c0_i32 : i32
  }
  func.func @transform_1(%arg0: i32) -> i32 {
    %c0_i32 = arith.constant 0 : i32
    %c0_i32_0 = arith.constant 0 : i32
    return %c0_i32 : i32
  }
  func.func @transform_2(%arg0: i32) -> (i32, i32) {
    %c0_i32 = arith.constant 0 : i32
    %c0_i32_0 = arith.constant 0 : i32
    return %arg0, %c0_i32 : i32, i32
  }
  func.func @transform_3(%arg0: i32) -> (i32, i32) {
    %c0_i32 = arith.constant 0 : i32
    %c0_i32_0 = arith.constant 0 : i32
    return %arg0, %c0_i32 : i32, i32
  }
}

</mosaic_0001>

<llo_original>
// kernel: tpu_custom_call.1
$region0: #{tpu_custom_call.1}
  #allocation0 [shape = 'u32[]', space=smem, size = 0x4, offset = 0x4, fixed_abs, tag = 'smem constant byte address 0x4 - core index']
  #allocation1 [shape = 'u32[72,128]{1,0:T(1,128)}', space=vmem, size = 0x9000, scoped, tag = 'internal scratch']
  #allocation2 [shape = 'f32[1]{0:T(128)S(6)}', space=smem, size = 0x200, scoped, tag = 'scoped memory for tpu_custom_call.1']
  #allocation3 [shape = 'f32[1]{0:T(128)S(6)}', space=smem, size = 0x200, scoped, tag = 'scoped memory for tpu_custom_call.1']
  %s0 = inlined_call_operand.<no memory space> [shape: f32[1], index: 0, kind: input, shape index: {}]
  %s1 = inlined_call_operand.<no memory space> [shape: f32[1], index: 1, kind: input, shape index: {}]
  %s2 = inlined_call_operand.hbm [shape: f32[16,32], index: 2, kind: input, shape index: {}]
  %s3 = inlined_call_operand.hbm [shape: f32[16,32], index: 3, kind: output, shape index: {}]
  %s4 = sld [smem:[#allocation0]]
  $region26: #{tpu_custom_call.1} parent=0
    _
  %s6 = ssub.s32 1, %s4
  %s7 = scalar_select 0, %s6, %s4
  %8 = sst [smem:[#allocation2]] %s0
  %9 = sst [smem:[#allocation3]] %s1
  $region1: #{tpu_custom_call.1} parent=0
    #allocation4 [shape = 'u8[8192]{0}', space=vmem, size = 0x2000, scoped, tag = 'input window, operand 2, single buffered']
    #allocation5 [shape = 's32[1]{0}', space=sflag, size = 0x4, scoped, tag = 'scoped memory for tpu_custom_call.1']
    #allocation6 [shape = 's32[1]{0}', space=sflag, size = 0x4, scoped, tag = 'scoped memory for tpu_custom_call.1']
    #allocation7 [shape = 'u8[8192]{0}', space=vmem, size = 0x2000, scoped, tag = 'output window, operand 0, single buffered']
    %10 = vsyncpa [#allocation5], 0
    %11 = vsyncpa [#allocation6], 0
    // Predicated region
    $region2: #{tpu_custom_call.1} parent=1 // pred_check
      _
    $region3: #{tpu_custom_call.1} parent=1 // pred_check_branch
      %13 = sbr.rel (0) target = $region5
    $region4: #{tpu_custom_call.1} parent=1 // pred_region
      _
    $region5: #{tpu_custom_call.1} parent=1 // pred_fallthru
      _
    // Predicated region
    $region6: #{tpu_custom_call.1} parent=1 // pred_check
      _
    $region7: #{tpu_custom_call.1} parent=1 // pred_check_branch
      %15 = sbr.rel (0) target = $region9
    $region8: #{tpu_custom_call.1} parent=1 // pred_region
      _
    $region9: #{tpu_custom_call.1} parent=1 // pred_fallthru
      _
    // Predicated region
    $region10: #{tpu_custom_call.1} parent=1 // pred_check
      _
    $region11: #{tpu_custom_call.1} parent=1 // pred_check_branch
      %17 = sbr.rel (0) target = $region13
    $region12: #{tpu_custom_call.1} parent=1 // pred_region
      %19 = vsyncadd [#allocation5], 0
      %s20 = sshll.u32 %s2, 4
      %s21 = int_to_ptr.hbm [resolvable:$true] %s20
      %s22 = sshll.u32 [#allocation4], 4
      %s23 = int_to_ptr.vmem [resolvable:$true] %s22
      %28 = dma.hbm_to_vmem [thread:$0]  %s21, 256, %s23, [#allocation5], 128, 128, 8
    $region13: #{tpu_custom_call.1} parent=1 // pred_fallthru
      _
    // Predicated region
    $region14: #{tpu_custom_call.1} parent=1 // pred_check
      _
    $region15: #{tpu_custom_call.1} parent=1 // pred_check_branch
      %30 = sbr.rel (0) target = $region17
    $region16: #{tpu_custom_call.1} parent=1 // pred_region
      %32 = dma.done [#allocation5], 256
    $region17: #{tpu_custom_call.1} parent=1 // pred_fallthru
      _
    %v33 = vld [vmem:[#allocation4] sm:$0xff]
    %v34 = vld [vmem:[#allocation4 + $0x8] sm:$0xff]
    %vm35 = vcmask 261120
    %v36 = vsel %vm35, %v33, 0.0
    %37 = vadd.xlane.f32.xlu0 %v36
    %v38 = vpop.xlane.xlu0 %37
    %v39 = vsel %vm35, %v34, 0.0
    %40 = vadd.xlane.f32.xlu0 %v39
    %v41 = vpop.xlane.xlu0 %40
    %v42 = vrcp.pop 32.0
    %v43 = vmul.f32 32.0, %v42
    %v44 = vsub.f32 1.0, %v43
    %v45 = vmul.f32 %v42, %v44
    %v46 = vadd.f32 %v42, %v45
    %vm47 = vweird.f32 %v42
    %v48 = vsel %vm47, %v42, %v46
    %v49 = vmul.f32 %v38, %v48
    %v50 = vmul.f32 %v41, %v48
    %v51 = vsub.f32 %v33, %v49
    %v52 = vsub.f32 %v34, %v50
    %v53 = vmul.f32 %v51, %v51
    %v54 = vmul.f32 %v52, %v52
    %v55 = vsel %vm35, %v53, 0.0
    %56 = vadd.xlane.f32.xlu0 %v55
    %v57 = vpop.xlane.xlu0 %56
    %v58 = vsel %vm35, %v54, 0.0
    %59 = vadd.xlane.f32.xlu0 %v58
    %v60 = vpop.xlane.xlu0 %59
    %v61 = vrcp.pop 31.0
    %v62 = vmul.f32 31.0, %v61
    %v63 = vsub.f32 1.0, %v62
    %v64 = vmul.f32 %v61, %v63
    %v65 = vadd.f32 %v61, %v64
    %vm66 = vweird.f32 %v61
    %v67 = vsel %vm66, %v61, %v65
    %v68 = vmul.f32 %v57, %v67
    %v69 = vmul.f32 %v60, %v67
    %v70 = vrsqrt.pop %v68
    %v71 = vmul.f32 %v70, %v68
    %v72 = vmul.f32 %v71, %v70
    %v73 = vmul.f32 0.5, %v72
    %v74 = vsub.f32 1.5, %v73
    %v75 = vmul.f32 %v70, %v74
    %v76 = vmul.f32 %v68, %v75
    %vm77 = vcmp.eq.f32.partialorder %v68, inf
    %v78 = vsel %vm77, %v68, %v76
    %vm79 = vcmp.eq.f32.partialorder %v68, 0.0
    %v80 = vand.u32 %v68, 2147483648
    %v81 = vsel %vm79, %v80, %v78
    %v82 = vrsqrt.pop %v69
    %v83 = vmul.f32 %v82, %v69
    %v84 = vmul.f32 %v83, %v82
    %v85 = vmul.f32 0.5, %v84
    %v86 = vsub.f32 1.5, %v85
    %v87 = vmul.f32 %v82, %v86
    %v88 = vmul.f32 %v69, %v87
    %vm89 = vcmp.eq.f32.partialorder %v69, inf
    %v90 = vsel %vm89, %v69, %v88
    %vm91 = vcmp.eq.f32.partialorder %v69, 0.0
    %v92 = vand.u32 %v69, 2147483648
    %v93 = vsel %vm91, %v92, %v90
    %v94 = vadd.f32 %v81, 1e-06
    %v95 = vadd.f32 %v93, 1e-06
    %v96 = vrcp.pop %v94
    %v97 = vmul.f32 %v94, %v96
    %v98 = vsub.f32 1.0, %v97
    %v99 = vmul.f32 %v96, %v98
    %v100 = vadd.f32 %v96, %v99
    %vm101 = vweird.f32 %v94
    %vm102 = vweird.f32 %v96
    %vm103 = vmor %vm101, %vm102
    %v104 = vsel %vm103, %v96, %v100
    %v105 = vand.u32 2147483647, %v94
    %vm106 = vcmp.eq.f32.partialorder %v105, 8.507059e+37
    %v107 = vand.u32 %v94, 2147483648
    %v108 = vor.u32 1.1754944e-38, %v107
    %v109 = vsel %vm106, %v108, %v104
    %v110 = vrcp.pop %v95
    %v111 = vmul.f32 %v95, %v110
    %v112 = vsub.f32 1.0, %v111
    %v113 = vmul.f32 %v110, %v112
    %v114 = vadd.f32 %v110, %v113
    %vm115 = vweird.f32 %v95
    %vm116 = vweird.f32 %v110
    %vm117 = vmor %vm115, %vm116
    %v118 = vsel %vm117, %v110, %v114
    %v119 = vand.u32 2147483647, %v95
    %vm120 = vcmp.eq.f32.partialorder %v119, 8.507059e+37
    %v121 = vand.u32 %v95, 2147483648
    %v122 = vor.u32 1.1754944e-38, %v121
    %v123 = vsel %vm120, %v122, %v118
    %s124 = sld [smem:[#allocation2]]
    %v125 = vstv %s124
    %v126 = vmul.f32 %v125, %v109
    %v127 = vmul.f32 %v125, %v123
    %v128 = vmul.f32 %v51, %v126
    %v129 = vmul.f32 %v52, %v127
    %s130 = sld [smem:[#allocation3]]
    %v131 = vstv %s130
    %v132 = vadd.f32 %v128, %v131
    %v133 = vadd.f32 %v129, %v131
    %134 = vst.msk [vmem:[#allocation7] sm:$0xff] %vm35, %v132
    %135 = vst.msk [vmem:[#allocation7 + $0x8] sm:$0xff] %vm35, %v133
    // Predicated region
    $region18: #{tpu_custom_call.1} parent=1 // pred_check
      _
    $region19: #{tpu_custom_call.1} parent=1 // pred_check_branch
      %137 = sbr.rel (0) target = $region21
    $region20: #{tpu_custom_call.1} parent=1 // pred_region
      %139 = vsyncadd [#allocation6], 0
      %s140 = sshll.u32 [#allocation7], 4
      %s141 = int_to_ptr.vmem [resolvable:$true] %s140
      %s142 = sshll.u32 %s3, 4
      %s143 = int_to_ptr.hbm [resolvable:$true] %s142
      %148 = dma.vmem_to_hbm [thread:$0]  %s141, 256, %s143, [#allocation6], 128, 128, 8
    $region21: #{tpu_custom_call.1} parent=1 // pred_fallthru
      _
    // Predicated region
    $region22: #{tpu_custom_call.1} parent=1 // pred_check
      _
    $region23: #{tpu_custom_call.1} parent=1 // pred_check_branch
      %150 = sbr.rel (0) target = $region25
    $region24: #{tpu_custom_call.1} parent=1 // pred_region
      %152 = dma.done [#allocation6], 256
    $region25: #{tpu_custom_call.1} parent=1 // pred_fallthru
      _
    %153 = vsyncpa [#allocation5], 1
    %154 = vsyncpa [#allocation6], 1

</llo_original>
